<compile_context>
chip_gen: v7x
topology: tpu7x:2x2x1
jax: 0.10.0
libtpu: 0.0.40
codegen_flags: <defaults>
</compile_context>

<pallas_src>
import functools

import jax
import jax.numpy as jnp
from jax.experimental import pallas as pl
from jax.experimental.pallas import tpu as pltpu

LANE = 128      # TPU lane width (latent dim 100 is zero-padded up to this)
SUBLANE = 8     # f32 sublane count (batch rows padded up to a multiple of this)


def _mf_loss_kernel(n, w_ref, h_ref, uid_ref, iid_ref, r_ref, inv_ref, o_ref, prod_scr):
    # n          : python int, number of real (non-padded) examples
    # w_ref      : (Rw, 1, Dp) f32 VMEM  -- full user-factor table, lane-padded
    # h_ref      : (Rh, 1, Dp) f32 VMEM  -- full item-factor table, lane-padded
    # uid_ref    : (n_pad,) int32 SMEM   -- user row ids (padded entries never read)
    # iid_ref    : (n_pad,) int32 SMEM   -- item row ids (padded entries never read)
    # r_ref      : (n_pad, 1) f32 VMEM   -- ratings (padded rows are 0)
    # inv_ref    : (1,) f32 SMEM         -- 1 / len(u)
    # o_ref      : (1, 1) f32 VMEM       -- scalar loss
    # prod_scr   : (n_pad, Dp) f32 VMEM scratch -- gathered elementwise products
    n_pad, dp = prod_scr.shape

    # In-kernel row gather: dynamic index on the leading (non-tiled) axis, static
    # sublane-offset stores into the scratch tile.  n is tiny (7) -> fully unrolled.
    for k in range(n):
        wk = w_ref[uid_ref[k]]                 # (1, Dp)
        hk = h_ref[iid_ref[k]]                 # (1, Dp)
        prod_scr[pl.ds(k, 1), :] = wk * hk

    # Padded rows contribute exactly 0 (pred = 0, rating = 0).
    if n < n_pad:
        prod_scr[pl.ds(n, n_pad - n), :] = jnp.zeros((n_pad - n, dp), jnp.float32)

    # One vectorized (8,128) tile: per-row dot (cross-lane reduce), squared error, sum.
    pred = jnp.sum(prod_scr[...], axis=1, keepdims=True)   # (n_pad, 1)
    err = pred - r_ref[...]
    total = jnp.sum(err * err)
    o_ref[...] = jnp.full((1, 1), total * inv_ref[0], dtype=o_ref.dtype)


def _pad_factor_table(M):
    """Lane-pad the latent dim to a multiple of LANE and reshape to (rows, 1, Dp) so the
    gather index sits on a non-tiled leading axis."""
    rows, dim = M.shape
    dp = max(LANE, ((dim + LANE - 1) // LANE) * LANE)
    Mp = jnp.pad(M.astype(jnp.float32), ((0, 0), (0, dp - dim)))
    return Mp.reshape(rows, 1, dp)


@jax.jit
def mf_forward(W, H, user_idx, item_idx, ratings_full):
    """Mirrors mf.forward: skips element 0 of u/i/r and divides by the full len(u)."""
    len_u = user_idx.shape[0]
    n = len_u - 1
    n_pad = max(SUBLANE, ((n + SUBLANE - 1) // SUBLANE) * SUBLANE)
    pad = n_pad - n

    Wp = _pad_factor_table(W)          # (user_rows, 1, Dp)
    Hp = _pad_factor_table(H)          # (item_rows, 1, Dp)
    dp = Wp.shape[-1]

    uid_p = jnp.pad(user_idx[1:].astype(jnp.int32), (0, pad))          # pad values unread
    iid_p = jnp.pad(item_idx[1:].astype(jnp.int32), (0, pad))
    r_p = jnp.pad(ratings_full[1:].astype(jnp.float32), (0, pad)).reshape(n_pad, 1)
    inv = jnp.full((1,), 1.0 / len_u, jnp.float32)

    out = pl.pallas_call(
        functools.partial(_mf_loss_kernel, n),
        out_shape=jax.ShapeDtypeStruct((1, 1), jnp.float32),
        in_specs=[
            pl.BlockSpec(memory_space=pltpu.MemorySpace.VMEM),   # W table (whole array)
            pl.BlockSpec(memory_space=pltpu.MemorySpace.VMEM),   # H table (whole array)
            pl.BlockSpec(memory_space=pltpu.MemorySpace.SMEM),   # user ids
            pl.BlockSpec(memory_space=pltpu.MemorySpace.SMEM),   # item ids
            pl.BlockSpec(memory_space=pltpu.MemorySpace.VMEM),   # ratings (n_pad, 1)
            pl.BlockSpec(memory_space=pltpu.MemorySpace.SMEM),   # 1/len(u)
        ],
        out_specs=pl.BlockSpec(memory_space=pltpu.MemorySpace.VMEM),
        scratch_shapes=[pltpu.VMEM((n_pad, dp), jnp.float32)],
    )(Wp, Hp, uid_p, iid_p, r_p, inv)
    return out[0, 0]


def mf_reference(W, H, user_idx, item_idx, ratings_full):
    len_u = user_idx.shape[0]
    uid = user_idx[1:]
    iid = item_idx[1:]
    r = ratings_full[1:].astype(jnp.float32)
    pred = jnp.sum(W[uid, :] * H[iid, :], axis=1)
    err = pred - r
    return jnp.sum(err * err) / len_u


if __name__ == "__main__":
    key = jax.random.PRNGKey(0)
    k_w, k_h, k_u, k_i, k_r = jax.random.split(key, 5)

    user_size = 10
    item_size = 12
    dim = 100
    batch = 8  # len(u); effective examples used = batch - 1 = 7 (loop starts at 1)

    # Deterministic parameter init (torch.rand -> uniform [0, 1))
    W = jax.random.uniform(k_w, (user_size + 1, dim), dtype=jnp.float32)
    H = jax.random.uniform(k_h, (item_size + 1, dim), dtype=jnp.float32)
    U = jax.random.uniform(key, (1, 1), dtype=jnp.float32)  # exists in __init__, unused

    # Example inputs: already-mapped integer user/item ids and float ratings.
    user_idx = jax.random.randint(k_u, (batch,), 0, user_size, dtype=jnp.int32)
    item_idx = jax.random.randint(k_i, (batch,), 0, item_size, dtype=jnp.int32)
    ratings = jax.random.uniform(k_r, (batch,), dtype=jnp.float32) * 5.0

    loss = mf_forward(W, H, user_idx, item_idx, ratings)
    loss = jax.block_until_ready(loss)

    ref = mf_reference(W, H, user_idx, item_idx, ratings)
    assert jnp.allclose(loss, ref, rtol=1e-5, atol=1e-5), (loss, ref)

    print("KERNEL_OK")
</pallas_src>

<mosaic_0001>
module attributes {stable_mosaic.version = 11 : i64} {
  func.func @_mf_loss_kernel(%arg0: memref<11x1x128xf32, #tpu.memory_space<vmem>>, %arg1: memref<13x1x128xf32, #tpu.memory_space<vmem>>, %arg2: memref<8xi32, #tpu.memory_space<smem>>, %arg3: memref<8xi32, #tpu.memory_space<smem>>, %arg4: memref<8x1xf32, #tpu.memory_space<vmem>>, %arg5: memref<1xf32, #tpu.memory_space<smem>>, %arg6: memref<1x1xf32, #tpu.memory_space<vmem>>, %arg7: memref<8x128xf32, #tpu.memory_space<vmem>>) attributes {dimension_semantics = [], scalar_prefetch = 0 : i64, scratch_operands = 1 : i64, tpu.core_type = #tpu.core_type<tc>} {
    %c0 = arith.constant 0 : index
    %0 = memref.load %arg2[%c0] : memref<8xi32, #tpu.memory_space<smem>>
    %1 = arith.index_cast %0 : i32 to index
    %c0_0 = arith.constant 0 : index
    %c0_1 = arith.constant 0 : index
    %2 = vector.load %arg0[%1, %c0_0, %c0_1] : memref<11x1x128xf32, #tpu.memory_space<vmem>>, vector<1x1x128xf32>
    %3 = vector.shape_cast %2 : vector<1x1x128xf32> to vector<1x128xf32>
    %c0_2 = arith.constant 0 : index
    %4 = memref.load %arg3[%c0_2] : memref<8xi32, #tpu.memory_space<smem>>
    %5 = arith.index_cast %4 : i32 to index
    %c0_3 = arith.constant 0 : index
    %c0_4 = arith.constant 0 : index
    %6 = vector.load %arg1[%5, %c0_3, %c0_4] : memref<13x1x128xf32, #tpu.memory_space<vmem>>, vector<1x1x128xf32>
    %7 = vector.shape_cast %6 : vector<1x1x128xf32> to vector<1x128xf32>
    %8 = arith.mulf %3, %7 : vector<1x128xf32>
    %c0_5 = arith.constant 0 : index
    %c0_6 = arith.constant 0 : index
    %9 = vector.load %arg7[%c0_5, %c0_6] : memref<8x128xf32, #tpu.memory_space<vmem>>, vector<1x128xf32>
    tpu.vector_store %arg7[%c0_5, %c0_6], %8 {strides = array<i32>} : memref<8x128xf32, #tpu.memory_space<vmem>>, vector<1x128xf32>,
    %c1 = arith.constant 1 : index
    %10 = memref.load %arg2[%c1] : memref<8xi32, #tpu.memory_space<smem>>
    %11 = arith.index_cast %10 : i32 to index
    %c0_7 = arith.constant 0 : index
    %c0_8 = arith.constant 0 : index
    %12 = vector.load %arg0[%11, %c0_7, %c0_8] : memref<11x1x128xf32, #tpu.memory_space<vmem>>, vector<1x1x128xf32>
    %13 = vector.shape_cast %12 : vector<1x1x128xf32> to vector<1x128xf32>
    %c1_9 = arith.constant 1 : index
    %14 = memref.load %arg3[%c1_9] : memref<8xi32, #tpu.memory_space<smem>>
    %15 = arith.index_cast %14 : i32 to index
    %c0_10 = arith.constant 0 : index
    %c0_11 = arith.constant 0 : index
    %16 = vector.load %arg1[%15, %c0_10, %c0_11] : memref<13x1x128xf32, #tpu.memory_space<vmem>>, vector<1x1x128xf32>
    %17 = vector.shape_cast %16 : vector<1x1x128xf32> to vector<1x128xf32>
    %18 = arith.mulf %13, %17 : vector<1x128xf32>
    %c1_12 = arith.constant 1 : index
    %c0_13 = arith.constant 0 : index
    %19 = vector.load %arg7[%c1_12, %c0_13] : memref<8x128xf32, #tpu.memory_space<vmem>>, vector<1x128xf32>
    tpu.vector_store %arg7[%c1_12, %c0_13], %18 {strides = array<i32>} : memref<8x128xf32, #tpu.memory_space<vmem>>, vector<1x128xf32>,
    %c2 = arith.constant 2 : index
    %20 = memref.load %arg2[%c2] : memref<8xi32, #tpu.memory_space<smem>>
    %21 = arith.index_cast %20 : i32 to index
    %c0_14 = arith.constant 0 : index
    %c0_15 = arith.constant 0 : index
    %22 = vector.load %arg0[%21, %c0_14, %c0_15] : memref<11x1x128xf32, #tpu.memory_space<vmem>>, vector<1x1x128xf32>
    %23 = vector.shape_cast %22 : vector<1x1x128xf32> to vector<1x128xf32>
    %c2_16 = arith.constant 2 : index
    %24 = memref.load %arg3[%c2_16] : memref<8xi32, #tpu.memory_space<smem>>
    %25 = arith.index_cast %24 : i32 to index
    %c0_17 = arith.constant 0 : index
    %c0_18 = arith.constant 0 : index
    %26 = vector.load %arg1[%25, %c0_17, %c0_18] : memref<13x1x128xf32, #tpu.memory_space<vmem>>, vector<1x1x128xf32>
    %27 = vector.shape_cast %26 : vector<1x1x128xf32> to vector<1x128xf32>
    %28 = arith.mulf %23, %27 : vector<1x128xf32>
    %c2_19 = arith.constant 2 : index
    %c0_20 = arith.constant 0 : index
    %29 = vector.load %arg7[%c2_19, %c0_20] : memref<8x128xf32, #tpu.memory_space<vmem>>, vector<1x128xf32>
    tpu.vector_store %arg7[%c2_19, %c0_20], %28 {strides = array<i32>} : memref<8x128xf32, #tpu.memory_space<vmem>>, vector<1x128xf32>,
    %c3 = arith.constant 3 : index
    %30 = memref.load %arg2[%c3] : memref<8xi32, #tpu.memory_space<smem>>
    %31 = arith.index_cast %30 : i32 to index
    %c0_21 = arith.constant 0 : index
    %c0_22 = arith.constant 0 : index
    %32 = vector.load %arg0[%31, %c0_21, %c0_22] : memref<11x1x128xf32, #tpu.memory_space<vmem>>, vector<1x1x128xf32>
    %33 = vector.shape_cast %32 : vector<1x1x128xf32> to vector<1x128xf32>
    %c3_23 = arith.constant 3 : index
    %34 = memref.load %arg3[%c3_23] : memref<8xi32, #tpu.memory_space<smem>>
    %35 = arith.index_cast %34 : i32 to index
    %c0_24 = arith.constant 0 : index
    %c0_25 = arith.constant 0 : index
    %36 = vector.load %arg1[%35, %c0_24, %c0_25] : memref<13x1x128xf32, #tpu.memory_space<vmem>>, vector<1x1x128xf32>
    %37 = vector.shape_cast %36 : vector<1x1x128xf32> to vector<1x128xf32>
    %38 = arith.mulf %33, %37 : vector<1x128xf32>
    %c3_26 = arith.constant 3 : index
    %c0_27 = arith.constant 0 : index
    %39 = vector.load %arg7[%c3_26, %c0_27] : memref<8x128xf32, #tpu.memory_space<vmem>>, vector<1x128xf32>
    tpu.vector_store %arg7[%c3_26, %c0_27], %38 {strides = array<i32>} : memref<8x128xf32, #tpu.memory_space<vmem>>, vector<1x128xf32>,
    %c4 = arith.constant 4 : index
    %40 = memref.load %arg2[%c4] : memref<8xi32, #tpu.memory_space<smem>>
    %41 = arith.index_cast %40 : i32 to index
    %c0_28 = arith.constant 0 : index
    %c0_29 = arith.constant 0 : index
    %42 = vector.load %arg0[%41, %c0_28, %c0_29] : memref<11x1x128xf32, #tpu.memory_space<vmem>>, vector<1x1x128xf32>
    %43 = vector.shape_cast %42 : vector<1x1x128xf32> to vector<1x128xf32>
    %c4_30 = arith.constant 4 : index
    %44 = memref.load %arg3[%c4_30] : memref<8xi32, #tpu.memory_space<smem>>
    %45 = arith.index_cast %44 : i32 to index
    %c0_31 = arith.constant 0 : index
    %c0_32 = arith.constant 0 : index
    %46 = vector.load %arg1[%45, %c0_31, %c0_32] : memref<13x1x128xf32, #tpu.memory_space<vmem>>, vector<1x1x128xf32>
    %47 = vector.shape_cast %46 : vector<1x1x128xf32> to vector<1x128xf32>
    %48 = arith.mulf %43, %47 : vector<1x128xf32>
    %c4_33 = arith.constant 4 : index
    %c0_34 = arith.constant 0 : index
    %49 = vector.load %arg7[%c4_33, %c0_34] : memref<8x128xf32, #tpu.memory_space<vmem>>, vector<1x128xf32>
    tpu.vector_store %arg7[%c4_33, %c0_34], %48 {strides = array<i32>} : memref<8x128xf32, #tpu.memory_space<vmem>>, vector<1x128xf32>,
    %c5 = arith.constant 5 : index
    %50 = memref.load %arg2[%c5] : memref<8xi32, #tpu.memory_space<smem>>
    %51 = arith.index_cast %50 : i32 to index
    %c0_35 = arith.constant 0 : index
    %c0_36 = arith.constant 0 : index
    %52 = vector.load %arg0[%51, %c0_35, %c0_36] : memref<11x1x128xf32, #tpu.memory_space<vmem>>, vector<1x1x128xf32>
    %53 = vector.shape_cast %52 : vector<1x1x128xf32> to vector<1x128xf32>
    %c5_37 = arith.constant 5 : index
    %54 = memref.load %arg3[%c5_37] : memref<8xi32, #tpu.memory_space<smem>>
    %55 = arith.index_cast %54 : i32 to index
    %c0_38 = arith.constant 0 : index
    %c0_39 = arith.constant 0 : index
    %56 = vector.load %arg1[%55, %c0_38, %c0_39] : memref<13x1x128xf32, #tpu.memory_space<vmem>>, vector<1x1x128xf32>
    %57 = vector.shape_cast %56 : vector<1x1x128xf32> to vector<1x128xf32>
    %58 = arith.mulf %53, %57 : vector<1x128xf32>
    %c5_40 = arith.constant 5 : index
    %c0_41 = arith.constant 0 : index
    %59 = vector.load %arg7[%c5_40, %c0_41] : memref<8x128xf32, #tpu.memory_space<vmem>>, vector<1x128xf32>
    tpu.vector_store %arg7[%c5_40, %c0_41], %58 {strides = array<i32>} : memref<8x128xf32, #tpu.memory_space<vmem>>, vector<1x128xf32>,
    %c6 = arith.constant 6 : index
    %60 = memref.load %arg2[%c6] : memref<8xi32, #tpu.memory_space<smem>>
    %61 = arith.index_cast %60 : i32 to index
    %c0_42 = arith.constant 0 : index
    %c0_43 = arith.constant 0 : index
    %62 = vector.load %arg0[%61, %c0_42, %c0_43] : memref<11x1x128xf32, #tpu.memory_space<vmem>>, vector<1x1x128xf32>
    %63 = vector.shape_cast %62 : vector<1x1x128xf32> to vector<1x128xf32>
    %c6_44 = arith.constant 6 : index
    %64 = memref.load %arg3[%c6_44] : memref<8xi32, #tpu.memory_space<smem>>
    %65 = arith.index_cast %64 : i32 to index
    %c0_45 = arith.constant 0 : index
    %c0_46 = arith.constant 0 : index
    %66 = vector.load %arg1[%65, %c0_45, %c0_46] : memref<13x1x128xf32, #tpu.memory_space<vmem>>, vector<1x1x128xf32>
    %67 = vector.shape_cast %66 : vector<1x1x128xf32> to vector<1x128xf32>
    %68 = arith.mulf %63, %67 : vector<1x128xf32>
    %c6_47 = arith.constant 6 : index
    %c0_48 = arith.constant 0 : index
    %69 = vector.load %arg7[%c6_47, %c0_48] : memref<8x128xf32, #tpu.memory_space<vmem>>, vector<1x128xf32>
    tpu.vector_store %arg7[%c6_47, %c0_48], %68 {strides = array<i32>} : memref<8x128xf32, #tpu.memory_space<vmem>>, vector<1x128xf32>,
    %cst = arith.constant 0.000000e+00 : f32
    %70 = vector.broadcast %cst : f32 to vector<1x128xf32>
    %c7 = arith.constant 7 : index
    %c0_49 = arith.constant 0 : index
    %71 = vector.load %arg7[%c7, %c0_49] : memref<8x128xf32, #tpu.memory_space<vmem>>, vector<1x128xf32>
    tpu.vector_store %arg7[%c7, %c0_49], %70 {strides = array<i32>} : memref<8x128xf32, #tpu.memory_space<vmem>>, vector<1x128xf32>,
    %c0_50 = arith.constant 0 : index
    %c0_51 = arith.constant 0 : index
    %72 = vector.load %arg7[%c0_50, %c0_51] : memref<8x128xf32, #tpu.memory_space<vmem>>, vector<8x128xf32>
    %cst_52 = arith.constant dense<0.000000e+00> : vector<8xf32>
    %73 = vector.multi_reduction <add>, %72, %cst_52 [1] : vector<8x128xf32> to vector<8xf32>
    %74 = vector.shape_cast %73 : vector<8xf32> to vector<8x1xf32>
    %c0_53 = arith.constant 0 : index
    %c0_54 = arith.constant 0 : index
    %75 = vector.load %arg4[%c0_53, %c0_54] : memref<8x1xf32, #tpu.memory_space<vmem>>, vector<8x1xf32>
    %76 = arith.subf %74, %75 : vector<8x1xf32>
    %77 = arith.mulf %76, %76 : vector<8x1xf32>
    %78 = vector.shape_cast %77 : vector<8x1xf32> to vector<1x8x1xf32>
    %cst_55 = arith.constant dense<0.000000e+00> : vector<1xf32>
    %79 = vector.multi_reduction <add>, %78, %cst_55 [1, 2] : vector<1x8x1xf32> to vector<1xf32>
    %80 = vector.shape_cast %79 : vector<1xf32> to vector<1x1x1xf32>
    %81 = vector.extract %80[0, 0, 0] : f32 from vector<1x1x1xf32>
    %c0_56 = arith.constant 0 : index
    %82 = memref.load %arg5[%c0_56] : memref<1xf32, #tpu.memory_space<smem>>
    %83 = arith.mulf %81, %82 : f32
    %84 = vector.broadcast %83 : f32 to vector<1x1xf32>
    %c0_57 = arith.constant 0 : index
    %c0_58 = arith.constant 0 : index
    %85 = vector.load %arg6[%c0_57, %c0_58] : memref<1x1xf32, #tpu.memory_space<vmem>>, vector<1x1xf32>
    tpu.vector_store %arg6[%c0_57, %c0_58], %84 {strides = array<i32>} : memref<1x1xf32, #tpu.memory_space<vmem>>, vector<1x1xf32>,
    return
  }
}

</mosaic_0001>

<llo_original>
// kernel: mf_forward.1
$region0: #{mf_forward.1}
  #allocation0 [shape = 'u32[]', space=smem, size = 0x4, offset = 0x4, fixed_abs, tag = 'smem constant byte address 0x4 - core index']
  #allocation1 [shape = 'u32[144,128]{1,0:T(1,128)}', space=vmem, size = 0x12000, scoped, tag = 'internal scratch']
  #allocation2 [shape = 'f32[8,128]{1,0:T(8,128)}', space=vmem, size = 0x1000, scoped, tag = 'scratch operand']
  #allocation3 [shape = 'f32[1]{0:T(128)S(6)}', space=smem, size = 0x200, scoped, tag = 'scoped memory for mf_forward.1']
  %s0 = inlined_call_operand.vmem [shape: f32[11,1,128], index: 0, kind: input, shape index: {}]
  %s1 = inlined_call_operand.vmem [shape: f32[13,1,128], index: 1, kind: input, shape index: {}]
  %s2 = inlined_call_operand.vmem [shape: s32[8], index: 2, kind: input, shape index: {}]
  %s3 = inlined_call_operand.vmem [shape: s32[8], index: 3, kind: input, shape index: {}]
  %s4 = inlined_call_operand.vmem [shape: f32[8,1], index: 4, kind: input, shape index: {}]
  %s5 = inlined_call_operand.<no memory space> [shape: f32[1], index: 5, kind: input, shape index: {}]
  %s6 = inlined_call_operand.hbm [shape: f32[1,1], index: 6, kind: output, shape index: {}]
  %s7 = sld [smem:[#allocation0]]
  $region42: #{mf_forward.1} parent=0
    _
  %s9 = ssub.s32 1, %s7
  %s10 = scalar_select 0, %s9, %s7
  %11 = sst [smem:[#allocation3]] %s5
  $region1: #{mf_forward.1} parent=0
    #allocation4 [shape = 'u8[512]{0}', space=smem, size = 0x200, scoped, tag = 'input window, operand 2, single buffered']
    #allocation5 [shape = 's32[1]{0}', space=sflag, size = 0x4, scoped, tag = 'scoped memory for mf_forward.1']
    #allocation6 [shape = 's32[1]{0}', space=sflag, size = 0x4, scoped, tag = 'scoped memory for mf_forward.1']
    #allocation7 [shape = 'u8[512]{0}', space=smem, size = 0x200, scoped, tag = 'input window, operand 3, single buffered']
    #allocation8 [shape = 's32[1]{0}', space=sflag, size = 0x4, scoped, tag = 'scoped memory for mf_forward.1']
    #allocation9 [shape = 'u8[512]{0}', space=vmem, size = 0x400, scoped, tag = 'output window, operand 0, single buffered']
    %12 = vsyncpa [#allocation6], 0
    %13 = vsyncpa [#allocation8], 0
    %14 = vsyncpa [#allocation5], 0
    // Predicated region
    $region2: #{mf_forward.1} parent=1 // pred_check
      _
    $region3: #{mf_forward.1} parent=1 // pred_check_branch
      %16 = sbr.rel (0) target = $region5
    $region4: #{mf_forward.1} parent=1 // pred_region
      _
    $region5: #{mf_forward.1} parent=1 // pred_fallthru
      _
    // Predicated region
    $region6: #{mf_forward.1} parent=1 // pred_check
      _
    $region7: #{mf_forward.1} parent=1 // pred_check_branch
      %18 = sbr.rel (0) target = $region9
    $region8: #{mf_forward.1} parent=1 // pred_region
      _
    $region9: #{mf_forward.1} parent=1 // pred_fallthru
      _
    // Predicated region
    $region10: #{mf_forward.1} parent=1 // pred_check
      _
    $region11: #{mf_forward.1} parent=1 // pred_check_branch
      %20 = sbr.rel (0) target = $region13
    $region12: #{mf_forward.1} parent=1 // pred_region
      %s22 = ssub.s32 16, 16
      %23 = vsyncadd [#allocation6], %s22
      %s25 = sshll.u32 %s2, 4
      %s26 = int_to_ptr.vmem [resolvable:$true] %s25
      %28 = dma.vmem_to_smem %s26, 16, [#allocation4], [#allocation6]
    $region13: #{mf_forward.1} parent=1 // pred_fallthru
      _
    // Predicated region
    $region14: #{mf_forward.1} parent=1 // pred_check
      _
    $region15: #{mf_forward.1} parent=1 // pred_check_branch
      %30 = sbr.rel (0) target = $region17
    $region16: #{mf_forward.1} parent=1 // pred_region
      %s32 = ssub.s32 16, 16
      %33 = vsyncadd [#allocation8], %s32
      %s35 = sshll.u32 %s3, 4
      %s36 = int_to_ptr.vmem [resolvable:$true] %s35
      %38 = dma.vmem_to_smem %s36, 16, [#allocation7], [#allocation8]
    $region17: #{mf_forward.1} parent=1 // pred_fallthru
      _
    // Predicated region
    $region18: #{mf_forward.1} parent=1 // pred_check
      _
    $region19: #{mf_forward.1} parent=1 // pred_check_branch
      %40 = sbr.rel (0) target = $region21
    $region20: #{mf_forward.1} parent=1 // pred_region
      _
    $region21: #{mf_forward.1} parent=1 // pred_fallthru
      _
    // Predicated region
    $region22: #{mf_forward.1} parent=1 // pred_check
      _
    $region23: #{mf_forward.1} parent=1 // pred_check_branch
      %42 = sbr.rel (0) target = $region25
    $region24: #{mf_forward.1} parent=1 // pred_region
      _
    $region25: #{mf_forward.1} parent=1 // pred_fallthru
      _
    // Predicated region
    $region26: #{mf_forward.1} parent=1 // pred_check
      _
    $region27: #{mf_forward.1} parent=1 // pred_check_branch
      %44 = sbr.rel (0) target = $region29
    $region28: #{mf_forward.1} parent=1 // pred_region
      %45 = dma.done [#allocation6], 16
    $region29: #{mf_forward.1} parent=1 // pred_fallthru
      _
    // Predicated region
    $region30: #{mf_forward.1} parent=1 // pred_check
      _
    $region31: #{mf_forward.1} parent=1 // pred_check_branch
      %47 = sbr.rel (0) target = $region33
    $region32: #{mf_forward.1} parent=1 // pred_region
      %48 = dma.done [#allocation8], 16
    $region33: #{mf_forward.1} parent=1 // pred_fallthru
      _
    %49 = sfence
    %s50 = sld [smem:[#allocation4]]
    %s51 = scalar_lea.vmem %s0, %s50
    %v52 = vld [vmem:[%s51] sm:$0x1]
    %s53 = sld [smem:[#allocation7]]
    %s54 = scalar_lea.vmem %s1, %s53
    %v55 = vld [vmem:[%s54] sm:$0x1]
    %v56 = vmul.f32 %v52, %v55
    %57 = vst [vmem:[#allocation2] sm:$0x1] %v56
    %s58 = sld [smem:[#allocation4 + $0x1]]
    %s59 = scalar_lea.vmem %s0, %s58
    %v60 = vld [vmem:[%s59] sm:$0x1]
    %s61 = sld [smem:[#allocation7 + $0x1]]
    %s62 = scalar_lea.vmem %s1, %s61
    %v63 = vld [vmem:[%s62] sm:$0x1]
    %v64 = vmul.f32 %v60, %v63
    %65 = vst [vmem:[#allocation2 + $0x1] sm:$0x1] %v64
    %s66 = sld [smem:[#allocation4 + $0x2]]
    %s67 = scalar_lea.vmem %s0, %s66
    %v68 = vld [vmem:[%s67] sm:$0x1]
    %s69 = sld [smem:[#allocation7 + $0x2]]
    %s70 = scalar_lea.vmem %s1, %s69
    %v71 = vld [vmem:[%s70] sm:$0x1]
    %v72 = vmul.f32 %v68, %v71
    %73 = vst [vmem:[#allocation2 + $0x2] sm:$0x1] %v72
    %s74 = sld [smem:[#allocation4 + $0x3]]
    %s75 = scalar_lea.vmem %s0, %s74
    %v76 = vld [vmem:[%s75] sm:$0x1]
    %s77 = sld [smem:[#allocation7 + $0x3]]
    %s78 = scalar_lea.vmem %s1, %s77
    %v79 = vld [vmem:[%s78] sm:$0x1]
    %v80 = vmul.f32 %v76, %v79
    %81 = vst [vmem:[#allocation2 + $0x3] sm:$0x1] %v80
    %s82 = sld [smem:[#allocation4 + $0x4]]
    %s83 = scalar_lea.vmem %s0, %s82
    %v84 = vld [vmem:[%s83] sm:$0x1]
    %s85 = sld [smem:[#allocation7 + $0x4]]
    %s86 = scalar_lea.vmem %s1, %s85
    %v87 = vld [vmem:[%s86] sm:$0x1]
    %v88 = vmul.f32 %v84, %v87
    %89 = vst [vmem:[#allocation2 + $0x4] sm:$0x1] %v88
    %s90 = sld [smem:[#allocation4 + $0x5]]
    %s91 = scalar_lea.vmem %s0, %s90
    %v92 = vld [vmem:[%s91] sm:$0x1]
    %s93 = sld [smem:[#allocation7 + $0x5]]
    %s94 = scalar_lea.vmem %s1, %s93
    %v95 = vld [vmem:[%s94] sm:$0x1]
    %v96 = vmul.f32 %v92, %v95
    %97 = vst [vmem:[#allocation2 + $0x5] sm:$0x1] %v96
    %s98 = sld [smem:[#allocation4 + $0x6]]
    %s99 = scalar_lea.vmem %s0, %s98
    %v100 = vld [vmem:[%s99] sm:$0x1]
    %s101 = sld [smem:[#allocation7 + $0x6]]
    %s102 = scalar_lea.vmem %s1, %s101
    %v103 = vld [vmem:[%s102] sm:$0x1]
    %v104 = vmul.f32 %v100, %v103
    %105 = vst [vmem:[#allocation2 + $0x6] sm:$0x1] %v104
    %106 = vst [vmem:[#allocation2 + $0x7] sm:$0x1] 0.0
    %v107 = vld [vmem:[#allocation2] sm:$0xff]
    %108 = vadd.xlane.f32.xlu0 %v107
    %v109 = vpop.xlane.xlu0 %108
    %v110 = vld [vmem:[%s4] sm:$0xff]
    %v111 = vsub.f32 %v109, %v110
    %v112 = vmul.f32 %v111, %v111
    %vm113 = vcmask 7168
    %v114 = vsel %vm113, %v112, 0.0
    %115 = vadd.xlane.f32.xlu0 %v114
    %v116 = vpop.xlane.xlu0 %115
    %v117 = vrot.slane %v116, 4
    %v118 = vadd.f32 %v116, %v117
    %v119 = vrot.slane %v118, 2
    %v120 = vadd.f32 %v118, %v119
    %v121 = vrot.slane %v120, 1
    %v122 = vadd.f32 %v120, %v121
    %s123 = vtos %v122
    %s124 = sld [smem:[#allocation3]]
    %s125 = smul.f32 %s123, %s124
    %v126 = vstv %s125
    %vm127 = vcmask 0
    %128 = vst.msk [vmem:[#allocation9] sm:$0x1] %vm127, %v126
    // Predicated region
    $region34: #{mf_forward.1} parent=1 // pred_check
      _
    $region35: #{mf_forward.1} parent=1 // pred_check_branch
      %130 = sbr.rel (0) target = $region37
    $region36: #{mf_forward.1} parent=1 // pred_region
      %s132 = ssub.s32 16, 16
      %133 = vsyncadd [#allocation5], %s132
      %s135 = sshll.u32 [#allocation9], 4
      %s136 = int_to_ptr.vmem [resolvable:$true] %s135
      %138 = dma.vmem_to_hbm [thread:$0]  %s136, 16, %s6, [#allocation5]
    $region37: #{mf_forward.1} parent=1 // pred_fallthru
      _
    // Predicated region
    $region38: #{mf_forward.1} parent=1 // pred_check
      _
    $region39: #{mf_forward.1} parent=1 // pred_check_branch
      %140 = sbr.rel (0) target = $region41
    $region40: #{mf_forward.1} parent=1 // pred_region
      %141 = dma.done [#allocation5], 16
    $region41: #{mf_forward.1} parent=1 // pred_fallthru
      _
    %142 = vsyncpa [#allocation5], 1
    %143 = vsyncpa [#allocation6], 1
    %144 = vsyncpa [#allocation8], 1

</llo_original>
